<compile_context>
chip_gen: v5e
topology: v5e:2x2
jax: 0.10.0
libtpu: 0.0.40
codegen_flags: <defaults>
</compile_context>

<pallas_src>
import functools
import numpy as np
import jax
import jax.numpy as jnp
from jax import lax
from jax.experimental import pallas as pl
from jax.experimental.pallas import tpu as pltpu

# ---------------- config (stands in for `opt`) ----------------
N_CLASSES   = 4
MARGIN      = 0.2      # opt.loss_margin_margin
NU          = 0.0      # opt.loss_margin_nu
BETA_VAL    = 1.2      # opt.loss_margin_beta (beta_constant = False -> per-class parameter)
KD_TAU      = 1.0      # opt.kd_tau      (forward's self.kd_tau)
KD_LAMBDA   = 1.0      # opt.kd_alpha    (forward's self.kd_lambda)
N_EPOCHS    = 10       # opt.n_epochs
DIFFUSION_W = 0.5      # opt.diffusion_w
TAU_DIFF    = 1.0      # opt.tau_diff    (forward's self.diffusion_tau)
PSD, OBDP   = True, True

_VMEM = pl.BlockSpec(memory_space=pltpu.MemorySpace.VMEM)
_SMEM = pl.BlockSpec(memory_space=pltpu.MemorySpace.SMEM)


# ---------------- fused kernel ----------------
def _criterion_kernel(epoch_ref, trip_ref, beta_ref, x_ref, t_ref, out_ref, *,
                      n_triplets, margin, nu, kd_tau, tau_diff, kd_scale,
                      diffusion_w, n_doublings, psd, obdp, has_triplets):
    # ------------- margin (triplet) loss: SMEM indices + dynamic row slices -------------
    if has_triplets:
        def trip_body(i, carry):
            sum_loss, cnt, beta_sum = carry
            a = trip_ref[0, i]
            p = trip_ref[1, i]
            n = trip_ref[2, i]
            lab = trip_ref[3, i]                      # anchor label
            av = x_ref[pl.ds(a, 1), :]                # (1, D) dynamic row reads, stays f32
            pv = x_ref[pl.ds(p, 1), :]
            nv = x_ref[pl.ds(n, 1), :]
            beta_t = beta_ref[lab]                    # SMEM scalar gather
            d_ap = jnp.sqrt(jnp.sum((av - pv) ** 2, axis=1, keepdims=True) + 1e-8)
            d_an = jnp.sqrt(jnp.sum((av - nv) ** 2, axis=1, keepdims=True) + 1e-8)
            pos = jnp.maximum(d_ap - beta_t + margin, 0.0)
            neg = jnp.maximum(beta_t - d_an + margin, 0.0)
            # torch: (pos>0) + (neg>0) on bools == logical OR, then sum
            act = jnp.logical_or(pos > 0.0, neg > 0.0).astype(jnp.float32)
            return (sum_loss + pos + neg, cnt + act, beta_sum + beta_t)

        zero = jnp.zeros((1, 1), jnp.float32)
        sum_loss, cnt, beta_sum = lax.fori_loop(0, n_triplets, trip_body,
                                                (zero, zero, zero))
        # cnt == 0  =>  sum_loss == 0, so dividing by max(cnt, 1) matches the torch branch.
        loss_rank = sum_loss / jnp.maximum(cnt, 1.0)
        if nu:
            loss_rank = loss_rank + nu * beta_sum
    else:
        loss_rank = jnp.zeros((1, 1), jnp.float32)

    if not psd:
        out_ref[...] = loss_rank
        return

    # ------------- OBD-SD knowledge distillation -------------
    x = x_ref[...]
    t = t_ref[...]
    b = x.shape[0]
    xb = x.astype(jnp.bfloat16)
    tb = t.astype(jnp.bfloat16)
    dn = (((1,), (1,)), ((), ()))   # contract last dims: A @ A.T without a transpose copy
    sim = lax.dot_general(xb, xb, dn, preferred_element_type=jnp.float32)   # (B, B)
    ts = lax.dot_general(tb, tb, dn, preferred_element_type=jnp.float32)    # (B, B)

    row = lax.broadcasted_iota(jnp.int32, (b, b), 0)
    col = lax.broadcasted_iota(jnp.int32, (b, b), 1)
    diag = row == col                                  # bool mask; no persistent f32 eye slab

    # student: log_softmax(sim / kd_tau)
    s = sim * (1.0 / kd_tau)
    s = s - jnp.max(s, axis=1, keepdims=True)
    logp = s - jnp.log(jnp.sum(jnp.exp(s), axis=1, keepdims=True))

    # teacher: softmax(ts / kd_tau); exact (B,1) reciprocal (cheap, closer to torch softmax
    # than pl.reciprocal(approx=True))
    tt = ts * (1.0 / kd_tau)
    tt = tt - jnp.max(tt, axis=1, keepdims=True)
    et = jnp.exp(tt)
    soft_t = et * (1.0 / jnp.sum(et, axis=1, keepdims=True))

    if obdp:
        # masked softmax((ts - 1e9*I) / tau_diff): row max is recomputed AFTER the diagonal
        # mask, so the off-diagonal exps cannot all underflow (diag ||t_i||^2 is usually the
        # row max) and the row sum is >= 1.
        wm = jnp.where(diag, -1e30, ts * (1.0 / tau_diff))
        wm = wm - jnp.max(wm, axis=1, keepdims=True)
        em = jnp.where(diag, 0.0, jnp.exp(wm))
        w_soft = em * (1.0 / jnp.sum(em, axis=1, keepdims=True))

        # (1 - d) * inv(I - d*W_soft) via a log-doubling Neumann series (rho(d*W_soft) <= d < 1):
        #   S0 = I + A,  P = A^2,  repeat: S <- S + P @ S, P <- P @ P  (last P@P skipped).
        # n_doublings iterations cover 2^(n_doublings+1) series terms with ~2*n_doublings
        # bf16 MXU matmuls (f32 accumulation).
        dw = diffusion_w * w_soft
        dwb = dw.astype(jnp.bfloat16)
        s_acc = jnp.where(diag, dw + 1.0, dw)          # I + A, f32
        if n_doublings > 0:
            p_acc = jnp.dot(dwb, dwb, preferred_element_type=jnp.float32)
            for i in range(n_doublings):               # short static loop (4-13 iters)
                pb = p_acc.astype(jnp.bfloat16)
                s_acc = s_acc + jnp.dot(pb, s_acc.astype(jnp.bfloat16),
                                        preferred_element_type=jnp.float32)
                if i + 1 < n_doublings:
                    p_acc = jnp.dot(pb, pb, preferred_element_type=jnp.float32)
        # fold the (1-d) scale into soft_t instead of scaling the (B,B) inverse
        tgt_rhs = ((1.0 - diffusion_w) * soft_t).astype(jnp.bfloat16)
        target = jnp.dot(s_acc.astype(jnp.bfloat16), tgt_rhs,
                         preferred_element_type=jnp.float32)
    else:
        target = soft_t

    # KLDivLoss(reduction='batchmean') with xlogy-safe masking (0 * log 0 := 0, like torch)
    safe_t = jnp.where(target > 0.0, target, 1.0)
    kl = jnp.where(target > 0.0, target * (jnp.log(safe_t) - logp), 0.0)
    loss_kd = jnp.sum(kl, keepdims=True) * (1.0 / b)                      # (1,1)

    # loss = loss_rank + (epoch / n_epochs) * kd_lambda * kd_tau^2 * loss_kd
    out_ref[...] = loss_rank + epoch_ref[0] * kd_scale * loss_kd


# ---------------- wrapper ----------------
def make_criterion_fn(b, d, n_triplets, *, psd=PSD, obdp=OBDP):
    has_triplets = n_triplets > 0
    t_eff = max(n_triplets, 1)

    # log-doubling step count: cover K terms with d^K <= 1e-7 (truncation far below bf16 noise)
    dmax = min(max(DIFFUSION_W, 1e-6), 0.999)
    n_terms = max(2, int(np.ceil(np.log(1e-7) / np.log(dmax))))
    n_doublings = max(0, int(np.ceil(np.log2(n_terms))) - 1)

    kernel = functools.partial(
        _criterion_kernel,
        n_triplets=t_eff, margin=MARGIN, nu=NU, kd_tau=KD_TAU, tau_diff=TAU_DIFF,
        kd_scale=KD_LAMBDA * KD_TAU ** 2, diffusion_w=DIFFUSION_W,
        n_doublings=n_doublings, psd=psd, obdp=obdp, has_triplets=has_triplets)

    n_sq_matmuls = (2 * n_doublings if n_doublings > 0 else 0) + 1      # doubling + target
    cost = pl.CostEstimate(
        flops=int(4 * b * b * d + 2 * b * b * b * n_sq_matmuls + 8 * t_eff * d),
        transcendentals=int(4 * b * b + 2 * t_eff),
        bytes_accessed=int(2 * b * d * 4 + 4 * t_eff * 4 + N_CLASSES * 4 + 8))

    # VMEM working set: ~a dozen (B,B) f32 slabs + a few bf16 copies + the two (B,D) inputs.
    vmem_est = 14 * b * b * 4 + 4 * b * d * 4 + (1 << 16)
    vmem_limit = int(min(64 << 20, max(32 << 20, 2 * vmem_est)))
    # TODO(synk): for production B (>=1024) on v7x (64 MiB VMEM, 2 TCs) split into a
    # teacher/Neumann phase and a row-tiled "parallel" student/KL phase with bf16-persistent
    # (B,B) slabs; whole-array single-core residency is fine at validation sizes and within
    # v5e/v6e's 128 MiB VMEM.

    call = pl.pallas_call(
        kernel,
        out_shape=jax.ShapeDtypeStruct((1, 1), jnp.float32),
        in_specs=[_SMEM, _SMEM, _SMEM, _VMEM, _VMEM],
        out_specs=_VMEM,
        compiler_params=pltpu.CompilerParams(vmem_limit_bytes=vmem_limit),
        cost_estimate=cost,
    )

    def fwd(epoch_frac, trip_idx, beta, batch, teacher_batch):
        return call(epoch_frac, trip_idx, beta, batch, teacher_batch)[0, 0]

    return jax.jit(fwd)


# ---------------- glue: deterministic batchminer (host side, once per label set) ----------------
def mine_triplets(labels, seed=0):
    labels = np.asarray(labels)
    rng = np.random.RandomState(seed)
    idx = np.arange(len(labels))
    trips = []
    for i in idx:
        pos_cand = idx[(labels == labels[i]) & (idx != i)]
        neg_cand = idx[labels != labels[i]]
        if len(pos_cand) and len(neg_cand):
            trips.append((int(i), int(rng.choice(pos_cand)), int(rng.choice(neg_cand))))
    return trips


def build_triplet_indices(triplets, labels):
    """Pack (anchor, positive, negative, anchor_label) as int32 rows for SMEM."""
    labels = np.asarray(labels)
    t = max(len(triplets), 1)
    idx = np.zeros((4, t), np.int32)
    for k, (a, p, n) in enumerate(triplets):
        idx[0, k] = a
        idx[1, k] = p
        idx[2, k] = n
        idx[3, k] = labels[a]
    return jnp.asarray(idx)


if __name__ == "__main__":
    B, D = 8, 32
    key = jax.random.PRNGKey(0)
    k1, k2 = jax.random.split(key)
    batch = jax.random.normal(k1, (B, D), dtype=jnp.float32)
    batch = batch / jnp.linalg.norm(batch, axis=1, keepdims=True)
    teacher_batch = jax.random.normal(k2, (B, D), dtype=jnp.float32)
    teacher_batch = teacher_batch / jnp.linalg.norm(teacher_batch, axis=1, keepdims=True)
    labels = np.array([0, 0, 1, 1, 2, 2, 3, 3], dtype=np.int32)
    # deterministic "parameter" init: beta = ones(n_classes) * beta_val
    beta_param = jnp.ones((N_CLASSES,), dtype=jnp.float32) * BETA_VAL

    # mining is static per label set; done once on host, consumed as SMEM int32 indices
    triplets = mine_triplets(labels)
    trip_idx = build_triplet_indices(triplets, labels)
    fwd = make_criterion_fn(B, D, len(triplets))

    epoch = 3
    epoch_frac = jnp.full((1,), epoch / N_EPOCHS, dtype=jnp.float32)

    loss = fwd(epoch_frac, trip_idx, beta_param, batch, teacher_batch)
    loss = jax.block_until_ready(loss)
    assert jnp.isfinite(loss)
    print("KERNEL_OK")
</pallas_src>

<mosaic_0001>
module attributes {stable_mosaic.version = 11 : i64} {
  func.func @_criterion_kernel(%arg0: memref<1xf32, #tpu.memory_space<smem>>, %arg1: memref<4x8xi32, #tpu.memory_space<smem>>, %arg2: memref<4xf32, #tpu.memory_space<smem>>, %arg3: memref<8x32xf32, #tpu.memory_space<vmem>>, %arg4: memref<8x32xf32, #tpu.memory_space<vmem>>, %arg5: memref<1x1xf32, #tpu.memory_space<vmem>>) attributes {dimension_semantics = [], scalar_prefetch = 0 : i64, scratch_operands = 0 : i64, tpu.core_type = #tpu.core_type<tc>} {
    %cst = arith.constant 0.000000e+00 : f32
    %0 = vector.broadcast %cst : f32 to vector<1x1xf32>
    %c0_i32 = arith.constant 0 : i32
    %c8_i32 = arith.constant 8 : i32
    %1 = arith.addi %c0_i32, %c8_i32 : i32
    %c1_i32 = arith.constant 1 : i32
    %2:2 = scf.for %arg6 = %c0_i32 to %1 step %c1_i32 iter_args(%arg7 = %0, %arg8 = %0) -> (vector<1x1xf32>, vector<1x1xf32>)  : i32 {
      %c0_42 = arith.constant 0 : index
      %112 = arith.index_cast %arg6 : i32 to index
      %113 = memref.load %arg1[%c0_42, %112] : memref<4x8xi32, #tpu.memory_space<smem>>
      %c1 = arith.constant 1 : index
      %114 = arith.index_cast %arg6 : i32 to index
      %115 = memref.load %arg1[%c1, %114] : memref<4x8xi32, #tpu.memory_space<smem>>
      %c2 = arith.constant 2 : index
      %116 = arith.index_cast %arg6 : i32 to index
      %117 = memref.load %arg1[%c2, %116] : memref<4x8xi32, #tpu.memory_space<smem>>
      %c3 = arith.constant 3 : index
      %118 = arith.index_cast %arg6 : i32 to index
      %119 = memref.load %arg1[%c3, %118] : memref<4x8xi32, #tpu.memory_space<smem>>
      %120 = arith.index_cast %113 : i32 to index
      %c0_43 = arith.constant 0 : index
      %121 = vector.load %arg3[%120, %c0_43] : memref<8x32xf32, #tpu.memory_space<vmem>>, vector<1x32xf32>
      %122 = arith.index_cast %115 : i32 to index
      %c0_44 = arith.constant 0 : index
      %123 = vector.load %arg3[%122, %c0_44] : memref<8x32xf32, #tpu.memory_space<vmem>>, vector<1x32xf32>
      %124 = arith.index_cast %117 : i32 to index
      %c0_45 = arith.constant 0 : index
      %125 = vector.load %arg3[%124, %c0_45] : memref<8x32xf32, #tpu.memory_space<vmem>>, vector<1x32xf32>
      %126 = arith.index_cast %119 : i32 to index
      %127 = memref.load %arg2[%126] : memref<4xf32, #tpu.memory_space<smem>>
      %128 = arith.subf %121, %123 : vector<1x32xf32>
      %129 = arith.mulf %128, %128 : vector<1x32xf32>
      %cst_46 = arith.constant dense<0.000000e+00> : vector<1xf32>
      %130 = vector.multi_reduction <add>, %129, %cst_46 [1] : vector<1x32xf32> to vector<1xf32>
      %131 = vector.shape_cast %130 : vector<1xf32> to vector<1x1xf32>
      %cst_47 = arith.constant 9.99999993E-9 : f32
      %132 = vector.broadcast %cst_47 : f32 to vector<1x1xf32>
      %133 = arith.addf %131, %132 : vector<1x1xf32>
      %134 = math.sqrt %133 : vector<1x1xf32>
      %135 = arith.subf %121, %125 : vector<1x32xf32>
      %136 = arith.mulf %135, %135 : vector<1x32xf32>
      %cst_48 = arith.constant dense<0.000000e+00> : vector<1xf32>
      %137 = vector.multi_reduction <add>, %136, %cst_48 [1] : vector<1x32xf32> to vector<1xf32>
      %138 = vector.shape_cast %137 : vector<1xf32> to vector<1x1xf32>
      %cst_49 = arith.constant 9.99999993E-9 : f32
      %139 = vector.broadcast %cst_49 : f32 to vector<1x1xf32>
      %140 = arith.addf %138, %139 : vector<1x1xf32>
      %141 = math.sqrt %140 : vector<1x1xf32>
      %142 = vector.broadcast %127 : f32 to vector<1x1xf32>
      %143 = arith.subf %134, %142 : vector<1x1xf32>
      %cst_50 = arith.constant 2.000000e-01 : f32
      %144 = vector.broadcast %cst_50 : f32 to vector<1x1xf32>
      %145 = arith.addf %143, %144 : vector<1x1xf32>
      %cst_51 = arith.constant 0.000000e+00 : f32
      %146 = vector.broadcast %cst_51 : f32 to vector<1x1xf32>
      %147 = arith.maximumf %145, %146 : vector<1x1xf32>
      %148 = vector.broadcast %127 : f32 to vector<1x1xf32>
      %149 = arith.subf %148, %141 : vector<1x1xf32>
      %cst_52 = arith.constant 2.000000e-01 : f32
      %150 = vector.broadcast %cst_52 : f32 to vector<1x1xf32>
      %151 = arith.addf %149, %150 : vector<1x1xf32>
      %cst_53 = arith.constant 0.000000e+00 : f32
      %152 = vector.broadcast %cst_53 : f32 to vector<1x1xf32>
      %153 = arith.maximumf %151, %152 : vector<1x1xf32>
      %cst_54 = arith.constant 0.000000e+00 : f32
      %154 = vector.broadcast %cst_54 : f32 to vector<1x1xf32>
      %155 = arith.cmpf ogt, %147, %154 : vector<1x1xf32>
      %cst_55 = arith.constant 0.000000e+00 : f32
      %156 = vector.broadcast %cst_55 : f32 to vector<1x1xf32>
      %157 = arith.cmpf ogt, %153, %156 : vector<1x1xf32>
      %158 = arith.ori %155, %157 : vector<1x1xi1>
      %159 = arith.extui %158 : vector<1x1xi1> to vector<1x1xi32>
      %160 = arith.sitofp %159 : vector<1x1xi32> to vector<1x1xf32>
      %161 = arith.addf %arg7, %147 : vector<1x1xf32>
      %162 = arith.addf %161, %153 : vector<1x1xf32>
      %163 = arith.addf %arg8, %160 : vector<1x1xf32>
      scf.yield %162, %163 : vector<1x1xf32>, vector<1x1xf32>
    }
    %c8_i32_0 = arith.constant 8 : i32
    %cst_1 = arith.constant 1.000000e+00 : f32
    %3 = vector.broadcast %cst_1 : f32 to vector<1x1xf32>
    %4 = arith.maximumf %2#1, %3 : vector<1x1xf32>
    %5 = arith.divf %2#0, %4 : vector<1x1xf32>
    %c0 = arith.constant 0 : index
    %c0_2 = arith.constant 0 : index
    %6 = vector.load %arg3[%c0, %c0_2] : memref<8x32xf32, #tpu.memory_space<vmem>>, vector<8x32xf32>
    %c0_3 = arith.constant 0 : index
    %c0_4 = arith.constant 0 : index
    %7 = vector.load %arg4[%c0_3, %c0_4] : memref<8x32xf32, #tpu.memory_space<vmem>>, vector<8x32xf32>
    %8 = arith.truncf %6 : vector<8x32xf32> to vector<8x32xbf16>
    %9 = arith.truncf %7 : vector<8x32xf32> to vector<8x32xbf16>
    %cst_5 = arith.constant dense<0.000000e+00> : vector<8x8xf32>
    %10 = tpu.matmul %8, %8, %cst_5 {dimension_numbers = #tpu.dot_dimension_numbers<[1], [1], [0], [0], [0, 0, 1, 0], [], []>} : vector<8x32xbf16>, vector<8x32xbf16>, vector<8x8xf32> -> vector<8x8xf32>
    %cst_6 = arith.constant dense<0.000000e+00> : vector<8x8xf32>
    %11 = tpu.matmul %9, %9, %cst_6 {dimension_numbers = #tpu.dot_dimension_numbers<[1], [1], [0], [0], [0, 0, 1, 0], [], []>} : vector<8x32xbf16>, vector<8x32xbf16>, vector<8x8xf32> -> vector<8x8xf32>
    %12 = tpu.iota {dimensions = array<i32: 0>} : vector<8x8xi32>
    %13 = tpu.iota {dimensions = array<i32: 1>} : vector<8x8xi32>
    %14 = arith.cmpi eq, %12, %13 : vector<8x8xi32>
    %cst_7 = arith.constant 1.000000e+00 : f32
    %15 = vector.broadcast %cst_7 : f32 to vector<8x8xf32>
    %16 = arith.mulf %10, %15 : vector<8x8xf32>
    %cst_8 = arith.constant dense<0xFF800000> : vector<8xf32>
    %17 = vector.multi_reduction <maximumf>, %16, %cst_8 [1] : vector<8x8xf32> to vector<8xf32>
    %18 = vector.shape_cast %17 : vector<8xf32> to vector<8x1xf32>
    %19 = vector.broadcast %18 : vector<8x1xf32> to vector<8x8xf32>
    %20 = arith.subf %16, %19 : vector<8x8xf32>
    %21 = math.exp %20 : vector<8x8xf32>
    %cst_9 = arith.constant dense<0.000000e+00> : vector<8xf32>
    %22 = vector.multi_reduction <add>, %21, %cst_9 [1] : vector<8x8xf32> to vector<8xf32>
    %23 = vector.shape_cast %22 : vector<8xf32> to vector<8x1xf32>
    %24 = math.log %23 : vector<8x1xf32>
    %25 = vector.broadcast %24 : vector<8x1xf32> to vector<8x8xf32>
    %26 = arith.subf %20, %25 : vector<8x8xf32>
    %cst_10 = arith.constant 1.000000e+00 : f32
    %27 = vector.broadcast %cst_10 : f32 to vector<8x8xf32>
    %28 = arith.mulf %11, %27 : vector<8x8xf32>
    %cst_11 = arith.constant dense<0xFF800000> : vector<8xf32>
    %29 = vector.multi_reduction <maximumf>, %28, %cst_11 [1] : vector<8x8xf32> to vector<8xf32>
    %30 = vector.shape_cast %29 : vector<8xf32> to vector<8x1xf32>
    %31 = vector.broadcast %30 : vector<8x1xf32> to vector<8x8xf32>
    %32 = arith.subf %28, %31 : vector<8x8xf32>
    %33 = math.exp %32 : vector<8x8xf32>
    %cst_12 = arith.constant dense<0.000000e+00> : vector<8xf32>
    %34 = vector.multi_reduction <add>, %33, %cst_12 [1] : vector<8x8xf32> to vector<8xf32>
    %35 = vector.shape_cast %34 : vector<8xf32> to vector<8x1xf32>
    %cst_13 = arith.constant 1.000000e+00 : f32
    %36 = vector.broadcast %cst_13 : f32 to vector<8x1xf32>
    %37 = arith.divf %36, %35 : vector<8x1xf32>
    %38 = vector.broadcast %37 : vector<8x1xf32> to vector<8x8xf32>
    %39 = arith.mulf %33, %38 : vector<8x8xf32>
    %cst_14 = arith.constant 1.000000e+00 : f32
    %40 = vector.broadcast %cst_14 : f32 to vector<8x8xf32>
    %41 = arith.mulf %11, %40 : vector<8x8xf32>
    %cst_15 = arith.constant -1.000000e+30 : f32
    %42 = vector.broadcast %cst_15 : f32 to vector<8x8xf32>
    %43 = arith.select %14, %42, %41 : vector<8x8xi1>, vector<8x8xf32>
    %cst_16 = arith.constant dense<0xFF800000> : vector<8xf32>
    %44 = vector.multi_reduction <maximumf>, %43, %cst_16 [1] : vector<8x8xf32> to vector<8xf32>
    %45 = vector.shape_cast %44 : vector<8xf32> to vector<8x1xf32>
    %46 = vector.broadcast %45 : vector<8x1xf32> to vector<8x8xf32>
    %47 = arith.subf %43, %46 : vector<8x8xf32>
    %48 = math.exp %47 : vector<8x8xf32>
    %cst_17 = arith.constant 0.000000e+00 : f32
    %49 = vector.broadcast %cst_17 : f32 to vector<8x8xf32>
    %50 = arith.select %14, %49, %48 : vector<8x8xi1>, vector<8x8xf32>
    %cst_18 = arith.constant dense<0.000000e+00> : vector<8xf32>
    %51 = vector.multi_reduction <add>, %50, %cst_18 [1] : vector<8x8xf32> to vector<8xf32>
    %52 = vector.shape_cast %51 : vector<8xf32> to vector<8x1xf32>
    %cst_19 = arith.constant 1.000000e+00 : f32
    %53 = vector.broadcast %cst_19 : f32 to vector<8x1xf32>
    %54 = arith.divf %53, %52 : vector<8x1xf32>
    %55 = vector.broadcast %54 : vector<8x1xf32> to vector<8x8xf32>
    %56 = arith.mulf %50, %55 : vector<8x8xf32>
    %cst_20 = arith.constant 5.000000e-01 : f32
    %57 = vector.broadcast %cst_20 : f32 to vector<8x8xf32>
    %58 = arith.mulf %57, %56 : vector<8x8xf32>
    %59 = arith.truncf %58 : vector<8x8xf32> to vector<8x8xbf16>
    %cst_21 = arith.constant 1.000000e+00 : f32
    %60 = vector.broadcast %cst_21 : f32 to vector<8x8xf32>
    %61 = arith.addf %58, %60 : vector<8x8xf32>
    %62 = arith.select %14, %61, %58 : vector<8x8xi1>, vector<8x8xf32>
    %cst_22 = arith.constant dense<0.000000e+00> : vector<8x8xf32>
    %63 = tpu.matmul %59, %59, %cst_22 {dimension_numbers = #tpu.dot_dimension_numbers<[1], [0], [0], [1], [0, 0, 1, 1], [], []>} : vector<8x8xbf16>, vector<8x8xbf16>, vector<8x8xf32> -> vector<8x8xf32>
    %64 = arith.truncf %63 : vector<8x8xf32> to vector<8x8xbf16>
    %65 = arith.truncf %62 : vector<8x8xf32> to vector<8x8xbf16>
    %cst_23 = arith.constant dense<0.000000e+00> : vector<8x8xf32>
    %66 = tpu.matmul %64, %65, %cst_23 {dimension_numbers = #tpu.dot_dimension_numbers<[1], [0], [0], [1], [0, 0, 1, 1], [], []>} : vector<8x8xbf16>, vector<8x8xbf16>, vector<8x8xf32> -> vector<8x8xf32>
    %67 = arith.addf %62, %66 : vector<8x8xf32>
    %cst_24 = arith.constant dense<0.000000e+00> : vector<8x8xf32>
    %68 = tpu.matmul %64, %64, %cst_24 {dimension_numbers = #tpu.dot_dimension_numbers<[1], [0], [0], [1], [0, 0, 1, 1], [], []>} : vector<8x8xbf16>, vector<8x8xbf16>, vector<8x8xf32> -> vector<8x8xf32>
    %69 = arith.truncf %68 : vector<8x8xf32> to vector<8x8xbf16>
    %70 = arith.truncf %67 : vector<8x8xf32> to vector<8x8xbf16>
    %cst_25 = arith.constant dense<0.000000e+00> : vector<8x8xf32>
    %71 = tpu.matmul %69, %70, %cst_25 {dimension_numbers = #tpu.dot_dimension_numbers<[1], [0], [0], [1], [0, 0, 1, 1], [], []>} : vector<8x8xbf16>, vector<8x8xbf16>, vector<8x8xf32> -> vector<8x8xf32>
    %72 = arith.addf %67, %71 : vector<8x8xf32>
    %cst_26 = arith.constant dense<0.000000e+00> : vector<8x8xf32>
    %73 = tpu.matmul %69, %69, %cst_26 {dimension_numbers = #tpu.dot_dimension_numbers<[1], [0], [0], [1], [0, 0, 1, 1], [], []>} : vector<8x8xbf16>, vector<8x8xbf16>, vector<8x8xf32> -> vector<8x8xf32>
    %74 = arith.truncf %73 : vector<8x8xf32> to vector<8x8xbf16>
    %75 = arith.truncf %72 : vector<8x8xf32> to vector<8x8xbf16>
    %cst_27 = arith.constant dense<0.000000e+00> : vector<8x8xf32>
    %76 = tpu.matmul %74, %75, %cst_27 {dimension_numbers = #tpu.dot_dimension_numbers<[1], [0], [0], [1], [0, 0, 1, 1], [], []>} : vector<8x8xbf16>, vector<8x8xbf16>, vector<8x8xf32> -> vector<8x8xf32>
    %77 = arith.addf %72, %76 : vector<8x8xf32>
    %cst_28 = arith.constant dense<0.000000e+00> : vector<8x8xf32>
    %78 = tpu.matmul %74, %74, %cst_28 {dimension_numbers = #tpu.dot_dimension_numbers<[1], [0], [0], [1], [0, 0, 1, 1], [], []>} : vector<8x8xbf16>, vector<8x8xbf16>, vector<8x8xf32> -> vector<8x8xf32>
    %79 = arith.truncf %78 : vector<8x8xf32> to vector<8x8xbf16>
    %80 = arith.truncf %77 : vector<8x8xf32> to vector<8x8xbf16>
    %cst_29 = arith.constant dense<0.000000e+00> : vector<8x8xf32>
    %81 = tpu.matmul %79, %80, %cst_29 {dimension_numbers = #tpu.dot_dimension_numbers<[1], [0], [0], [1], [0, 0, 1, 1], [], []>} : vector<8x8xbf16>, vector<8x8xbf16>, vector<8x8xf32> -> vector<8x8xf32>
    %82 = arith.addf %77, %81 : vector<8x8xf32>
    %cst_30 = arith.constant 5.000000e-01 : f32
    %83 = vector.broadcast %cst_30 : f32 to vector<8x8xf32>
    %84 = arith.mulf %83, %39 : vector<8x8xf32>
    %85 = arith.truncf %84 : vector<8x8xf32> to vector<8x8xbf16>
    %86 = arith.truncf %82 : vector<8x8xf32> to vector<8x8xbf16>
    %cst_31 = arith.constant dense<0.000000e+00> : vector<8x8xf32>
    %87 = tpu.matmul %86, %85, %cst_31 {dimension_numbers = #tpu.dot_dimension_numbers<[1], [0], [0], [1], [0, 0, 1, 1], [], []>} : vector<8x8xbf16>, vector<8x8xbf16>, vector<8x8xf32> -> vector<8x8xf32>
    %cst_32 = arith.constant 0.000000e+00 : f32
    %88 = vector.broadcast %cst_32 : f32 to vector<8x8xf32>
    %89 = arith.cmpf ogt, %87, %88 : vector<8x8xf32>
    %cst_33 = arith.constant 1.000000e+00 : f32
    %90 = vector.broadcast %cst_33 : f32 to vector<8x8xf32>
    %91 = arith.select %89, %87, %90 : vector<8x8xi1>, vector<8x8xf32>
    %cst_34 = arith.constant 0.000000e+00 : f32
    %92 = vector.broadcast %cst_34 : f32 to vector<8x8xf32>
    %93 = arith.cmpf ogt, %87, %92 : vector<8x8xf32>
    %94 = math.log %91 : vector<8x8xf32>
    %95 = arith.subf %94, %26 : vector<8x8xf32>
    %96 = arith.mulf %87, %95 : vector<8x8xf32>
    %cst_35 = arith.constant 0.000000e+00 : f32
    %97 = vector.broadcast %cst_35 : f32 to vector<8x8xf32>
    %98 = arith.select %93, %96, %97 : vector<8x8xi1>, vector<8x8xf32>
    %99 = vector.shape_cast %98 : vector<8x8xf32> to vector<1x8x8xf32>
    %cst_36 = arith.constant dense<0.000000e+00> : vector<1xf32>
    %100 = vector.multi_reduction <add>, %99, %cst_36 [1, 2] : vector<1x8x8xf32> to vector<1xf32>
    %101 = vector.shape_cast %100 : vector<1xf32> to vector<1x1x1xf32>
    %102 = vector.extract %101[0, 0, 0] : f32 from vector<1x1x1xf32>
    %103 = vector.broadcast %102 : f32 to vector<1x1xf32>
    %cst_37 = arith.constant 1.250000e-01 : f32
    %104 = vector.broadcast %cst_37 : f32 to vector<1x1xf32>
    %105 = arith.mulf %103, %104 : vector<1x1xf32>
    %c0_38 = arith.constant 0 : index
    %106 = memref.load %arg0[%c0_38] : memref<1xf32, #tpu.memory_space<smem>>
    %cst_39 = arith.constant 1.000000e+00 : f32
    %107 = arith.mulf %106, %cst_39 : f32
    %108 = vector.broadcast %107 : f32 to vector<1x1xf32>
    %109 = arith.mulf %108, %105 : vector<1x1xf32>
    %110 = arith.addf %5, %109 : vector<1x1xf32>
    %c0_40 = arith.constant 0 : index
    %c0_41 = arith.constant 0 : index
    %111 = vector.load %arg5[%c0_40, %c0_41] : memref<1x1xf32, #tpu.memory_space<vmem>>, vector<1x1xf32>
    tpu.vector_store %arg5[%c0_40, %c0_41], %110 {strides = array<i32>} : memref<1x1xf32, #tpu.memory_space<vmem>>, vector<1x1xf32>,
    return
  }
}

</mosaic_0001>

<llo_original>
// kernel: fwd.1
$region0: #{fwd.1}
  #allocation0 [shape = 'u32[]', space=smem, size = 0x4, offset = 0x4, fixed_abs, tag = 'smem constant byte address 0x4 - core index']
  #allocation1 [shape = 'u32[72,128]{1,0:T(1,128)}', space=vmem, size = 0x9000, scoped, tag = 'internal scratch']
  #allocation2 [shape = 'f32[1]{0:T(128)S(6)}', space=smem, size = 0x200, scoped, tag = 'scoped memory for fwd.1']
  %s0 = inlined_call_operand.<no memory space> [shape: f32[1], index: 0, kind: input, shape index: {}]
  %s1 = inlined_call_operand.hbm [shape: s32[4,8], index: 1, kind: input, shape index: {}]
  %s2 = inlined_call_operand.vmem [shape: f32[4], index: 2, kind: input, shape index: {}]
  %s3 = inlined_call_operand.hbm [shape: f32[8,32], index: 3, kind: input, shape index: {}]
  %s4 = inlined_call_operand.hbm [shape: f32[8,32], index: 4, kind: input, shape index: {}]
  %s5 = inlined_call_operand.hbm [shape: f32[1,1], index: 5, kind: output, shape index: {}]
  %s6 = sld [smem:[#allocation0]]
  $region53: #{fwd.1} parent=0
    _
  %s8 = ssub.s32 1, %s6
  %s9 = scalar_select 0, %s8, %s6
  %10 = sst [smem:[#allocation2]] %s0
  $region1: #{fwd.1} parent=0
    #allocation3 [shape = 'u8[2048]{0}', space=smem, size = 0x800, scoped, tag = 'input window, operand 1, single buffered']
    #allocation4 [shape = 's32[1]{0}', space=sflag, size = 0x4, scoped, tag = 'scoped memory for fwd.1']
    #allocation5 [shape = 's32[1]{0}', space=sflag, size = 0x4, scoped, tag = 'scoped memory for fwd.1']
    #allocation6 [shape = 's32[1]{0}', space=sflag, size = 0x4, scoped, tag = 'scoped memory for fwd.1']
    #allocation7 [shape = 's32[1]{0}', space=sflag, size = 0x4, scoped, tag = 'scoped memory for fwd.1']
    #allocation8 [shape = 'u8[512]{0}', space=smem, size = 0x200, scoped, tag = 'input window, operand 2, single buffered']
    #allocation9 [shape = 'u8[4096]{0}', space=vmem, size = 0x1000, scoped, tag = 'input window, operand 3, single buffered']
    #allocation10 [shape = 'u8[4096]{0}', space=vmem, size = 0x1000, scoped, tag = 'input window, operand 4, single buffered']
    #allocation11 [shape = 's32[1]{0}', space=sflag, size = 0x4, scoped, tag = 'scoped memory for fwd.1']
    #allocation12 [shape = 'u8[512]{0}', space=vmem, size = 0x400, scoped, tag = 'output window, operand 0, single buffered']
    %11 = vsyncpa [#allocation6], 0
    %12 = vsyncpa [#allocation7], 0
    %13 = vsyncpa [#allocation4], 0
    %14 = vsyncpa [#allocation11], 0
    %15 = vsyncpa [#allocation5], 0
    // Predicated region
    $region2: #{fwd.1} parent=1 // pred_check
      _
    $region3: #{fwd.1} parent=1 // pred_check_branch
      %17 = sbr.rel (0) target = $region5
    $region4: #{fwd.1} parent=1 // pred_region
      _
    $region5: #{fwd.1} parent=1 // pred_fallthru
      _
    // Predicated region
    $region6: #{fwd.1} parent=1 // pred_check
      _
    $region7: #{fwd.1} parent=1 // pred_check_branch
      %19 = sbr.rel (0) target = $region9
    $region8: #{fwd.1} parent=1 // pred_region
      %21 = vsyncadd [#allocation6], 0
      %s23 = sshll.u32 %s1, 4
      %s24 = int_to_ptr.hbm [resolvable:$true] %s23
      %26 = dma.hbm_to_smem %s24, 64, [#allocation3], [#allocation6]
    $region9: #{fwd.1} parent=1 // pred_fallthru
      _
    // Predicated region
    $region10: #{fwd.1} parent=1 // pred_check
      _
    $region11: #{fwd.1} parent=1 // pred_check_branch
      %28 = sbr.rel (0) target = $region13
    $region12: #{fwd.1} parent=1 // pred_region
      %30 = vsyncadd [#allocation7], 0
      %s32 = sshll.u32 %s2, 4
      %s33 = int_to_ptr.vmem [resolvable:$true] %s32
      %35 = dma.vmem_to_smem %s33, 16, [#allocation8], [#allocation7]
    $region13: #{fwd.1} parent=1 // pred_fallthru
      _
    // Predicated region
    $region14: #{fwd.1} parent=1 // pred_check
      _
    $region15: #{fwd.1} parent=1 // pred_check_branch
      %37 = sbr.rel (0) target = $region17
    $region16: #{fwd.1} parent=1 // pred_region
      %39 = vsyncadd [#allocation4], 0
      %s41 = sshll.u32 %s3, 4
      %s42 = int_to_ptr.hbm [resolvable:$true] %s41
      %s43 = sshll.u32 [#allocation9], 4
      %s44 = int_to_ptr.vmem [resolvable:$true] %s43
      %46 = dma.hbm_to_vmem [thread:$0]  %s42, 128, %s44, [#allocation4]
    $region17: #{fwd.1} parent=1 // pred_fallthru
      _
    // Predicated region
    $region18: #{fwd.1} parent=1 // pred_check
      _
    $region19: #{fwd.1} parent=1 // pred_check_branch
      %48 = sbr.rel (0) target = $region21
    $region20: #{fwd.1} parent=1 // pred_region
      %50 = vsyncadd [#allocation11], 0
      %s52 = sshll.u32 %s4, 4
      %s53 = int_to_ptr.hbm [resolvable:$true] %s52
      %s54 = sshll.u32 [#allocation10], 4
      %s55 = int_to_ptr.vmem [resolvable:$true] %s54
      %57 = dma.hbm_to_vmem [thread:$0]  %s53, 128, %s55, [#allocation11]
    $region21: #{fwd.1} parent=1 // pred_fallthru
      _
    // Predicated region
    $region22: #{fwd.1} parent=1 // pred_check
      _
    $region23: #{fwd.1} parent=1 // pred_check_branch
      %59 = sbr.rel (0) target = $region25
    $region24: #{fwd.1} parent=1 // pred_region
      %61 = dma.done [#allocation6], 64
    $region25: #{fwd.1} parent=1 // pred_fallthru
      _
    // Predicated region
    $region26: #{fwd.1} parent=1 // pred_check
      _
    $region27: #{fwd.1} parent=1 // pred_check_branch
      %63 = sbr.rel (0) target = $region29
    $region28: #{fwd.1} parent=1 // pred_region
      %65 = dma.done [#allocation7], 16
    $region29: #{fwd.1} parent=1 // pred_fallthru
      _
    // Predicated region
    $region30: #{fwd.1} parent=1 // pred_check
      _
    $region31: #{fwd.1} parent=1 // pred_check_branch
      %67 = sbr.rel (0) target = $region33
    $region32: #{fwd.1} parent=1 // pred_region
      %69 = dma.done [#allocation4], 128
    $region33: #{fwd.1} parent=1 // pred_fallthru
      _
    // Predicated region
    $region34: #{fwd.1} parent=1 // pred_check
      _
    $region35: #{fwd.1} parent=1 // pred_check_branch
      %71 = sbr.rel (0) target = $region37
    $region36: #{fwd.1} parent=1 // pred_region
      %73 = dma.done [#allocation11], 128
    $region37: #{fwd.1} parent=1 // pred_fallthru
      _
    %74 = sfence
    loop: start=0, step=1, limit=8
    $region38: #{fwd.1} parent=1 // loop_pre_header
      _
    $region39: #{fwd.1} parent=1 // loop_header
      %s77 = sphi 0, %s81
      %p78 = scmp.ge.s32.totalorder %s77, 8
      %v82 = vphi 0.0, %v158
      %v83 = vphi 0.0, %v159
    $region40: #{fwd.1} parent=1 // loop_header_branch
      %80 = sbr.rel (%p78) target = $region44
    $region41: #{fwd.1} parent=1 // loop_body
      %s84 = sld [smem:[#allocation3 + %s77]]
      %s85 = sshra.s32 %s77, 7
      %s86 = sand.u32 %s77, 127
      %s87 = sadd.s32 %s85, 1
      %s88 = smul.u32 %s87, 128
      %s89 = sshra.s32 %s77, 7
      %s90 = sand.u32 %s77, 127
      %s91 = sadd.s32 %s88, %s90
      %s92 = sld [smem:[#allocation3 + %s91]]
      %s93 = sadd.s32 %s85, 2
      %s94 = smul.u32 %s93, 128
      %s95 = sadd.s32 %s94, %s90
      %s96 = sld [smem:[#allocation3 + %s95]]
      %s97 = sadd.s32 %s85, 3
      %s98 = smul.u32 %s97, 128
      %s99 = sadd.s32 %s98, %s90
      %s100 = sld [smem:[#allocation3 + %s99]]
      %s101 = scalar_lea.vmem [#allocation9], %s84
      %v102 = vld [vmem:[%s101] sm:$0x1]
      %s103 = scalar_lea.vmem [#allocation9], %s92
      %v104 = vld [vmem:[%s103] sm:$0x1]
      %s105 = scalar_lea.vmem [#allocation9], %s96
      %v106 = vld [vmem:[%s105] sm:$0x1]
      %s107 = sld [smem:[#allocation8 + %s100]]
      %v108 = vsub.f32 %v102, %v104
      %v109 = vmul.f32 %v108, %v108
      %vm110 = vcmask 253952
      %v111 = vsel %vm110, %v109, 0.0
      %112 = vadd.xlane.f32.xlu0 %v111
      %v113 = vpop.xlane.xlu0 %112
      %v114 = vadd.f32 %v113, 1e-08
      %v115 = vrsqrt.pop %v114
      %v116 = vmul.f32 %v115, %v114
      %v117 = vmul.f32 %v116, %v115
      %v118 = vmul.f32 0.5, %v117
      %v119 = vsub.f32 1.5, %v118
      %v120 = vmul.f32 %v115, %v119
      %v121 = vmul.f32 %v114, %v120
      %vm122 = vcmp.eq.f32.partialorder %v114, inf
      %v123 = vsel %vm122, %v114, %v121
      %vm124 = vcmp.eq.f32.partialorder %v114, 0.0
      %v125 = vand.u32 %v114, 2147483648
      %v126 = vsel %vm124, %v125, %v123
      %v127 = vsub.f32 %v102, %v106
      %v128 = vmul.f32 %v127, %v127
      %v129 = vsel %vm110, %v128, 0.0
      %130 = vadd.xlane.f32.xlu0 %v129
      %v131 = vpop.xlane.xlu0 %130
      %v132 = vadd.f32 %v131, 1e-08
      %v133 = vrsqrt.pop %v132
      %v134 = vmul.f32 %v133, %v132
      %v135 = vmul.f32 %v134, %v133
      %v136 = vmul.f32 0.5, %v135
      %v137 = vsub.f32 1.5, %v136
      %v138 = vmul.f32 %v133, %v137
      %v139 = vmul.f32 %v132, %v138
      %vm140 = vcmp.eq.f32.partialorder %v132, inf
      %v141 = vsel %vm140, %v132, %v139
      %vm142 = vcmp.eq.f32.partialorder %v132, 0.0
      %v143 = vand.u32 %v132, 2147483648
      %v144 = vsel %vm142, %v143, %v141
      %v145 = vstv %s107
      %v146 = vsub.f32 %v126, %v145
      %v147 = vadd.f32 %v146, 0.2
      %v148 = vmax.f32 %v147, 0.0
      %v149 = vsub.f32 %v145, %v144
      %v150 = vadd.f32 %v149, 0.2
      %v151 = vmax.f32 %v150, 0.0
      %vm152 = vcmp.gt.f32.partialorder %v148, 0.0
      %vm153 = vcmp.gt.f32.partialorder %v151, 0.0
      %vm154 = vmor %vm152, %vm153
      %v155 = vsel %vm154, 1, 0
      %v156 = vcvt.s32.f32 %v155
      %v157 = vadd.f32 %v82, %v148
      %v158 = vadd.f32 %v157, %v151
      %v159 = vadd.f32 %v83, %v156
    $region42: #{fwd.1} parent=1 // loop_footer
      %s81 = sadd.s32 1, %s77
    $region43: #{fwd.1} parent=1 // loop_footer_branch
      %76 = sbr.rel target = $region39
    $region44: #{fwd.1} parent=1 // loop_exit
      _
    %v160 = vmax.f32 %v83, 1.0
    %v161 = vrcp.pop %v160
    %v162 = vmul.f32 %v160, %v161
    %v163 = vsub.f32 1.0, %v162
    %v164 = vmul.f32 %v161, %v163
    %v165 = vadd.f32 %v161, %v164
    %vm166 = vweird.f32 %v160
    %vm167 = vweird.f32 %v161
    %vm168 = vmor %vm166, %vm167
    %v169 = vsel %vm168, %v161, %v165
    %v170 = vand.u32 2147483647, %v160
    %vm171 = vcmp.eq.f32.partialorder %v170, 8.507059e+37
    %v172 = vand.u32 %v160, 2147483648
    %v173 = vor.u32 1.1754944e-38, %v172
    %v174 = vsel %vm171, %v173, %v169
    %v175 = vmul.f32 %v82, %v174
    %v176 = vld [vmem:[#allocation9] sm:$0xff]
    %v177 = vld [vmem:[#allocation10] sm:$0xff]
    %v178 = vpack.c.bf16 %v176, %v176
    %v179 = vpack.c.bf16 %v177, %v177
    %vm180 = vcmask 261120
    %v182 = vsel %vm180, %v178, 0
    %184 = vmatpush.bf16.xpose.msra.mxu0 0
    %185 = vmatpush.bf16.xpose.msra.mxu0 0
    %186 = vmatpush.bf16.xpose.msra.mxu0 0
    %187 = vmatpush.bf16.xpose.msra.mxu0 0
    %188 = vmatpush.bf16.xpose.msra.mxu0 0
    %189 = vmatpush.bf16.xpose.msra.mxu0 0
    %190 = vmatpush.bf16.xpose.msra.mxu0 0
    %191 = vmatpush.bf16.xpose.msra.mxu0 %v182
    %192 = vmatmul.bf16.gmra.mxu0 %v182
    %v193 = vpop.f32.mrf.mxu0
    %v194 = vadd.f32 0.0, %v193
    %v195 = vpop.f32.mrf.mxu0
    %196 = vdwg.mxu0
    %v198 = vsel %vm180, %v179, 0
    %200 = vmatpush.bf16.xpose.msra.mxu0 0
    %201 = vmatpush.bf16.xpose.msra.mxu0 0
    %202 = vmatpush.bf16.xpose.msra.mxu0 0
    %203 = vmatpush.bf16.xpose.msra.mxu0 0
    %204 = vmatpush.bf16.xpose.msra.mxu0 0
    %205 = vmatpush.bf16.xpose.msra.mxu0 0
    %206 = vmatpush.bf16.xpose.msra.mxu0 0
    %207 = vmatpush.bf16.xpose.msra.mxu0 %v198
    %208 = vmatmul.bf16.gmra.mxu0 %v198
    %v209 = vpop.f32.mrf.mxu0
    %v210 = vadd.f32 0.0, %v209
    %v211 = vpop.f32.mrf.mxu0
    %212 = vdwg.mxu0
    %v213 = vlaneseq
    %v214 = vshrl.u32 %v213, 7
    %v215 = vlaneseq
    %v216 = vand.u32 %v215, 127
    %vm217 = vcmp.eq.s32.totalorder %v214, %v216
    %vm218 = vcmask 64512
    %v219 = vsel %vm218, %v194, -inf
    %220 = vmax.xlane.f32.xlu0 %v219
    %v221 = vpop.xlane.xlu0 %220
    %v222 = vsub.f32 %v194, %v221
    %v223 = vmul.f32 %v222, 1.442695
    %v224 = vpow.pop %v223
    %v225 = vsel %vm218, %v224, 0.0
    %226 = vadd.xlane.f32.xlu0 %v225
    %v227 = vpop.xlane.xlu0 %226
    %v228 = vlog2.pop %v227
    %v229 = vmul.f32 %v228, 0.6931472
    %v230 = vsub.f32 %v222, %v229
    %v231 = vsel %vm218, %v210, -inf
    %232 = vmax.xlane.f32.xlu0 %v231
    %v233 = vpop.xlane.xlu0 %232
    %v234 = vsub.f32 %v210, %v233
    %v235 = vmul.f32 %v234, 1.442695
    %v236 = vpow.pop %v235
    %v237 = vsel %vm218, %v236, 0.0
    %238 = vadd.xlane.f32.xlu0 %v237
    %v239 = vpop.xlane.xlu0 %238
    %v240 = vrcp.pop %v239
    %v241 = vmul.f32 %v239, %v240
    %v242 = vsub.f32 1.0, %v241
    %v243 = vmul.f32 %v240, %v242
    %v244 = vadd.f32 %v240, %v243
    %vm245 = vweird.f32 %v239
    %vm246 = vweird.f32 %v240
    %vm247 = vmor %vm245, %vm246
    %v248 = vsel %vm247, %v240, %v244
    %v249 = vand.u32 2147483647, %v239
    %vm250 = vcmp.eq.f32.partialorder %v249, 8.507059e+37
    %v251 = vand.u32 %v239, 2147483648
    %v252 = vor.u32 1.1754944e-38, %v251
    %v253 = vsel %vm250, %v252, %v248
    %v254 = vmul.f32 1.0, %v253
    %v255 = vmul.f32 %v236, %v254
    %v256 = vsel %vm217, -1e+30, %v210
    %v257 = vsel %vm218, %v256, -inf
    %258 = vmax.xlane.f32.xlu0 %v257
    %v259 = vpop.xlane.xlu0 %258
    %v260 = vsub.f32 %v256, %v259
    %v261 = vmul.f32 %v260, 1.442695
    %v262 = vpow.pop %v261
    %v263 = vsel %vm217, 0.0, %v262
    %v264 = vsel %vm218, %v263, 0.0
    %265 = vadd.xlane.f32.xlu0 %v264
    %v266 = vpop.xlane.xlu0 %265
    %v267 = vrcp.pop %v266
    %v268 = vmul.f32 %v266, %v267
    %v269 = vsub.f32 1.0, %v268
    %v270 = vmul.f32 %v267, %v269
    %v271 = vadd.f32 %v267, %v270
    %vm272 = vweird.f32 %v266
    %vm273 = vweird.f32 %v267
    %vm274 = vmor %vm272, %vm273
    %v275 = vsel %vm274, %v267, %v271
    %v276 = vand.u32 2147483647, %v266
    %vm277 = vcmp.eq.f32.partialorder %v276, 8.507059e+37
    %v278 = vand.u32 %v266, 2147483648
    %v279 = vor.u32 1.1754944e-38, %v278
    %v280 = vsel %vm277, %v279, %v275
    %v281 = vmul.f32 1.0, %v280
    %v282 = vmul.f32 %v263, %v281
    %v283 = vmul.f32 %v282, 0.5
    %v284 = vpack.c.bf16 %v283, %v283
    %v285 = vadd.f32 %v283, 1.0
    %v286 = vsel %vm217, %v285, %v283
    %v288 = vsel %vm218, %v284, 0
    %vm290 = vcmask 1043456
    %v291 = vsel %vm290, %v284, 0
    %293 = vmatpush.bf16.msra.mxu0 0
    %294 = vmatpush.bf16.msra.mxu0 0
    %295 = vmatpush.bf16.msra.mxu0 0
    %296 = vmatpush.bf16.msra.mxu0 0
    %297 = vmatpush.bf16.msra.mxu0 0
    %298 = vmatpush.bf16.msra.mxu0 0
    %299 = vmatpush.bf16.msra.mxu0 0
    %300 = vmatpush.bf16.msra.mxu0 %v291
    %301 = vmatmul.bf16.gmra.mxu0 %v288
    %v302 = vpop.f32.mrf.mxu0
    %v303 = vadd.f32 0.0, %v302
    %v304 = vpop.f32.mrf.mxu0
    %305 = vdwg.mxu0
    %v306 = vpack.c.bf16 %v303, %v303
    %v307 = vpack.c.bf16 %v286, %v286
    %v309 = vsel %vm218, %v306, 0
    %v312 = vsel %vm290, %v307, 0
    %314 = vmatpush.bf16.msra.mxu0 0
    %315 = vmatpush.bf16.msra.mxu0 0
    %316 = vmatpush.bf16.msra.mxu0 0
    %317 = vmatpush.bf16.msra.mxu0 0
    %318 = vmatpush.bf16.msra.mxu0 0
    %319 = vmatpush.bf16.msra.mxu0 0
    %320 = vmatpush.bf16.msra.mxu0 0
    %321 = vmatpush.bf16.msra.mxu0 %v312
    %322 = vmatmul.bf16.gmra.mxu0 %v309
    %v323 = vpop.f32.mrf.mxu0
    %v324 = vadd.f32 0.0, %v323
    %v325 = vpop.f32.mrf.mxu0
    %326 = vdwg.mxu0
    %v327 = vadd.f32 %v286, %v324
    %v328 = vsel %vm290, %v306, 0
    %330 = vmatpush.bf16.msra.mxu0 0
    %331 = vmatpush.bf16.msra.mxu0 0
    %332 = vmatpush.bf16.msra.mxu0 0
    %333 = vmatpush.bf16.msra.mxu0 0
    %334 = vmatpush.bf16.msra.mxu0 0
    %335 = vmatpush.bf16.msra.mxu0 0
    %336 = vmatpush.bf16.msra.mxu0 0
    %337 = vmatpush.bf16.msra.mxu0 %v328
    %338 = vmatmul.bf16.gmra.mxu0 %v309
    %v339 = vpop.f32.mrf.mxu0
    %v340 = vadd.f32 0.0, %v339
    %v341 = vpop.f32.mrf.mxu0
    %342 = vdwg.mxu0
    %v343 = vpack.c.bf16 %v340, %v340
    %v344 = vpack.c.bf16 %v327, %v327
    %v346 = vsel %vm218, %v343, 0
    %v349 = vsel %vm290, %v344, 0
    %351 = vmatpush.bf16.msra.mxu0 0
    %352 = vmatpush.bf16.msra.mxu0 0
    %353 = vmatpush.bf16.msra.mxu0 0
    %354 = vmatpush.bf16.msra.mxu0 0
    %355 = vmatpush.bf16.msra.mxu0 0
    %356 = vmatpush.bf16.msra.mxu0 0
    %357 = vmatpush.bf16.msra.mxu0 0
    %358 = vmatpush.bf16.msra.mxu0 %v349
    %359 = vmatmul.bf16.gmra.mxu0 %v346
    %v360 = vpop.f32.mrf.mxu0
    %v361 = vadd.f32 0.0, %v360
    %v362 = vpop.f32.mrf.mxu0
    %363 = vdwg.mxu0
    %v364 = vadd.f32 %v327, %v361
    %v365 = vsel %vm290, %v343, 0
    %367 = vmatpush.bf16.msra.mxu0 0
    %368 = vmatpush.bf16.msra.mxu0 0
    %369 = vmatpush.bf16.msra.mxu0 0
    %370 = vmatpush.bf16.msra.mxu0 0
    %371 = vmatpush.bf16.msra.mxu0 0
    %372 = vmatpush.bf16.msra.mxu0 0
    %373 = vmatpush.bf16.msra.mxu0 0
    %374 = vmatpush.bf16.msra.mxu0 %v365
    %375 = vmatmul.bf16.gmra.mxu0 %v346
    %v376 = vpop.f32.mrf.mxu0
    %v377 = vadd.f32 0.0, %v376
    %v378 = vpop.f32.mrf.mxu0
    %379 = vdwg.mxu0
    %v380 = vpack.c.bf16 %v377, %v377
    %v381 = vpack.c.bf16 %v364, %v364
    %v383 = vsel %vm218, %v380, 0
    %v386 = vsel %vm290, %v381, 0
    %388 = vmatpush.bf16.msra.mxu0 0
    %389 = vmatpush.bf16.msra.mxu0 0
    %390 = vmatpush.bf16.msra.mxu0 0
    %391 = vmatpush.bf16.msra.mxu0 0
    %392 = vmatpush.bf16.msra.mxu0 0
    %393 = vmatpush.bf16.msra.mxu0 0
    %394 = vmatpush.bf16.msra.mxu0 0
    %395 = vmatpush.bf16.msra.mxu0 %v386
    %396 = vmatmul.bf16.gmra.mxu0 %v383
    %v397 = vpop.f32.mrf.mxu0
    %v398 = vadd.f32 0.0, %v397
    %v399 = vpop.f32.mrf.mxu0
    %400 = vdwg.mxu0
    %v401 = vadd.f32 %v364, %v398
    %v402 = vsel %vm290, %v380, 0
    %404 = vmatpush.bf16.msra.mxu0 0
    %405 = vmatpush.bf16.msra.mxu0 0
    %406 = vmatpush.bf16.msra.mxu0 0
    %407 = vmatpush.bf16.msra.mxu0 0
    %408 = vmatpush.bf16.msra.mxu0 0
    %409 = vmatpush.bf16.msra.mxu0 0
    %410 = vmatpush.bf16.msra.mxu0 0
    %411 = vmatpush.bf16.msra.mxu0 %v402
    %412 = vmatmul.bf16.gmra.mxu0 %v383
    %v413 = vpop.f32.mrf.mxu0
    %v414 = vadd.f32 0.0, %v413
    %v415 = vpop.f32.mrf.mxu0
    %416 = vdwg.mxu0
    %v417 = vpack.c.bf16 %v414, %v414
    %v418 = vpack.c.bf16 %v401, %v401
    %v420 = vsel %vm218, %v417, 0
    %v423 = vsel %vm290, %v418, 0
    %425 = vmatpush.bf16.msra.mxu0 0
    %426 = vmatpush.bf16.msra.mxu0 0
    %427 = vmatpush.bf16.msra.mxu0 0
    %428 = vmatpush.bf16.msra.mxu0 0
    %429 = vmatpush.bf16.msra.mxu0 0
    %430 = vmatpush.bf16.msra.mxu0 0
    %431 = vmatpush.bf16.msra.mxu0 0
    %432 = vmatpush.bf16.msra.mxu0 %v423
    %433 = vmatmul.bf16.gmra.mxu0 %v420
    %v434 = vpop.f32.mrf.mxu0
    %v435 = vadd.f32 0.0, %v434
    %v436 = vpop.f32.mrf.mxu0
    %437 = vdwg.mxu0
    %v438 = vadd.f32 %v401, %v435
    %v439 = vmul.f32 %v255, 0.5
    %v440 = vpack.c.bf16 %v439, %v439
    %v441 = vpack.c.bf16 %v438, %v438
    %v443 = vsel %vm218, %v441, 0
    %v446 = vsel %vm290, %v440, 0
    %448 = vmatpush.bf16.msra.mxu0 0
    %449 = vmatpush.bf16.msra.mxu0 0
    %450 = vmatpush.bf16.msra.mxu0 0
    %451 = vmatpush.bf16.msra.mxu0 0
    %452 = vmatpush.bf16.msra.mxu0 0
    %453 = vmatpush.bf16.msra.mxu0 0
    %454 = vmatpush.bf16.msra.mxu0 0
    %455 = vmatpush.bf16.msra.mxu0 %v446
    %456 = vmatmul.bf16.gmra.mxu0 %v443
    %v457 = vpop.f32.mrf.mxu0
    %v458 = vadd.f32 0.0, %v457
    %v459 = vpop.f32.mrf.mxu0
    %460 = vdwg.mxu0
    %vm461 = vcmp.gt.f32.partialorder %v458, 0.0
    %v462 = vsel %vm461, %v458, 1.0
    %v463 = vlog2.pop %v462
    %v464 = vmul.f32 %v463, 0.6931472
    %v465 = vsub.f32 %v464, %v230
    %v466 = vmul.f32 %v458, %v465
    %v467 = vsel %vm461, %v466, 0.0
    %v468 = vsel %vm218, %v467, 0.0
    %469 = vadd.xlane.f32.xlu0 %v468
    %v470 = vpop.xlane.xlu0 %469
    %v471 = vrot.slane %v470, 4
    %v472 = vadd.f32 %v470, %v471
    %v473 = vrot.slane %v472, 2
    %v474 = vadd.f32 %v472, %v473
    %v475 = vrot.slane %v474, 1
    %v476 = vadd.f32 %v474, %v475
    %s477 = vtos %v476
    %v478 = vstv %s477
    %v479 = vmul.f32 %v478, 0.125
    %s480 = sld [smem:[#allocation2]]
    %v481 = vstv %s480
    %v482 = vmul.f32 %v481, %v479
    %v483 = vadd.f32 %v175, %v482
    %vm484 = vcmask 0
    %485 = vst.msk [vmem:[#allocation12] sm:$0x1] %vm484, %v483
    // Predicated region
    $region45: #{fwd.1} parent=1 // pred_check
      _
    $region46: #{fwd.1} parent=1 // pred_check_branch
      %487 = sbr.rel (0) target = $region48
    $region47: #{fwd.1} parent=1 // pred_region
      %489 = vsyncadd [#allocation5], 0
      %s491 = sshll.u32 [#allocation12], 4
      %s492 = int_to_ptr.vmem [resolvable:$true] %s491
      %s493 = sshll.u32 %s5, 4
      %s494 = int_to_ptr.hbm [resolvable:$true] %s493
      %496 = dma.vmem_to_hbm [thread:$0]  %s492, 16, %s494, [#allocation5]
    $region48: #{fwd.1} parent=1 // pred_fallthru
      _
    // Predicated region
    $region49: #{fwd.1} parent=1 // pred_check
      _
    $region50: #{fwd.1} parent=1 // pred_check_branch
      %498 = sbr.rel (0) target = $region52
    $region51: #{fwd.1} parent=1 // pred_region
      %500 = dma.done [#allocation5], 16
    $region52: #{fwd.1} parent=1 // pred_fallthru
      _
    %501 = vsyncpa [#allocation4], 1
    %502 = vsyncpa [#allocation11], 1
    %503 = vsyncpa [#allocation5], 1
    %504 = vsyncpa [#allocation6], 1
    %505 = vsyncpa [#allocation7], 1

</llo_original>
